<compile_context>
chip_gen: v7x
topology: tpu7x:2x2x1
jax: 0.10.0
libtpu: 0.0.40
codegen_flags: <defaults>
</compile_context>

<pallas_src>
import functools

import jax
import jax.numpy as jnp
from jax.experimental import pallas as pl
from jax.experimental.pallas import tpu as pltpu

LANES = 128
# ~4 MiB of input bytes per block regardless of dtype.
TARGET_BLOCK_BYTES = 4 * 1024 * 1024
# Leading "parallel" grid axis; sharded across TensorCores on multi-TC chips.
NUM_SPLITS = 2
VMEM_LIMIT_BYTES = 48 * 1024 * 1024


def _sublane_align(dtype) -> int:
    # Minimum sublane multiple for a packed dtype: 8 (4B), 16 (2B), 32 (1B).
    return max(8, 32 // jnp.dtype(dtype).itemsize)


def _round_up(x, m):
    return ((x + m - 1) // m) * m


def _rmsle_partial_kernel(pred_ref, actual_ref, out_ref, *,
                          steps_per_split, block_rows, valid_rows,
                          mask_from, needs_mask):
    i = pl.program_id(1)

    @pl.when(i == 0)
    def _():
        out_ref[...] = jnp.zeros_like(out_ref)

    # Inputs arrive in their original dtype; all math is done in f32
    # (keeping log1p in f32 is required for the 1e-5 tolerance).
    p = pred_ref[...].astype(jnp.float32)
    a = actual_ref[...].astype(jnp.float32)
    d = jnp.log1p(jnp.abs(p)) - jnp.log1p(jnp.abs(a))
    d2 = d * d

    def _accumulate(x):
        # Lane-parallel partial sums: collapse only the leading (vreg-count)
        # axis with VPU adds; keep the (8,128) vreg shape for the accumulator.
        out_ref[...] += jnp.sum(x.reshape(-1, 8, LANES), axis=0)

    if needs_mask:
        b_log = pl.program_id(0) * steps_per_split + i

        @pl.when(b_log < mask_from)
        def _():
            # Steady-state blocks: no iota/compare/select.
            _accumulate(d2)

        @pl.when(b_log >= mask_from)
        def _():
            # Edge (ragged last) or duplicate (clamped) blocks: one select on
            # d2; select yields exact 0 even if the garbage tail made Inf/NaN.
            row_ids = (jax.lax.broadcasted_iota(jnp.int32, d2.shape, 0)
                       + b_log * block_rows)
            _accumulate(jnp.where(row_ids < valid_rows, d2, 0.0))
    else:
        _accumulate(d2)


def rmsle_loss(pred, actual):
    """sqrt(mean((log(|pred|+1) - log(|actual|+1))^2)) as a scalar f32."""
    assert pred.shape == actual.shape
    n = pred.size
    sub = max(_sublane_align(pred.dtype), _sublane_align(actual.dtype))
    itemsize = max(jnp.dtype(pred.dtype).itemsize,
                   jnp.dtype(actual.dtype).itemsize)

    pf = pred.reshape(-1)
    af = actual.reshape(-1)
    # Pad only to a lane multiple (128) -- much rarer than sub*128 -- and to at
    # least `sub` rows so a sub-aligned block never exceeds the array extent.
    # Zero padding contributes exactly 0 (log1p(0)=0); we divide by true n.
    padded = max(_round_up(n, LANES), sub * LANES)
    if padded != n:
        pf = jnp.pad(pf, (0, padded - n))
        af = jnp.pad(af, (0, padded - n))
    rows = padded // LANES
    p2 = pf.reshape(rows, LANES)          # free reshape, original dtype
    a2 = af.reshape(rows, LANES)

    # Dtype-scaled block rows: keep per-block bytes ~constant.
    target_rows = max(sub, TARGET_BLOCK_BYTES // (LANES * itemsize))
    block_rows = min(target_rows, (rows // sub) * sub)   # multiple of sub, <= rows
    num_blocks = pl.cdiv(rows, block_rows)
    splits = min(NUM_SPLITS, num_blocks)
    steps = pl.cdiv(num_blocks, splits)

    ragged_last = (rows % block_rows) != 0
    mask_from = num_blocks - 1 if ragged_last else num_blocks
    needs_mask = (splits * steps) > mask_from

    def block_map(c, i):
        # Clamp so duplicate tail blocks (num_blocks % splits != 0) stay in
        # bounds; they are fully masked out inside the kernel.
        return (jnp.minimum(c * steps + i, num_blocks - 1), 0)

    kernel = functools.partial(
        _rmsle_partial_kernel,
        steps_per_split=steps,
        block_rows=block_rows,
        valid_rows=rows,
        mask_from=mask_from,
        needs_mask=needs_mask,
    )

    partials = pl.pallas_call(
        kernel,
        out_shape=jax.ShapeDtypeStruct((splits, 8, LANES), jnp.float32),
        grid_spec=pltpu.PrefetchScalarGridSpec(
            num_scalar_prefetch=0,
            grid=(splits, steps),
            in_specs=[
                pl.BlockSpec((block_rows, LANES), block_map),
                pl.BlockSpec((block_rows, LANES), block_map),
            ],
            out_specs=pl.BlockSpec((None, 8, LANES), lambda c, i: (c, 0, 0)),
        ),
        compiler_params=pltpu.CompilerParams(
            # Split axis shards across TCs on multi-core chips; reduction axis
            # last and "arbitrary" (output block resident across it).
            dimension_semantics=("parallel", "arbitrary"),
            vmem_limit_bytes=VMEM_LIMIT_BYTES,
        ),
    )(p2, a2)

    # Single cross-lane collapse + sqrt(mean) on a tiny array, outside the kernel.
    return jnp.sqrt(jnp.sum(partials) / jnp.float32(n))


def _rmsle_ref(pred, actual):
    lp = jnp.log(jnp.abs(pred.astype(jnp.float32)) + 1.0)
    la = jnp.log(jnp.abs(actual.astype(jnp.float32)) + 1.0)
    return jnp.sqrt(jnp.mean((lp - la) ** 2))


if __name__ == "__main__":
    key = jax.random.PRNGKey(0)
    k1, k2, k3, k4 = jax.random.split(key, 4)

    # Small NCHW inputs (lane-divisible fast path: no padding, single block).
    pred = jax.random.normal(k1, (2, 4, 16, 16), dtype=jnp.float32)
    actual = jax.random.normal(k2, (2, 4, 16, 16), dtype=jnp.float32)
    loss = rmsle_loss(pred, actual)
    jax.block_until_ready(loss)
    ref = _rmsle_ref(pred, actual)
    assert jnp.allclose(loss, ref, rtol=1e-5, atol=1e-6), (loss, ref)

    # Ragged shape: exercises the 128-pad fallback, the 2-way split and the
    # masked edge-block path.
    pred_r = jax.random.normal(k3, (3, 5, 7, 11), dtype=jnp.float32)
    actual_r = jax.random.normal(k4, (3, 5, 7, 11), dtype=jnp.float32)
    loss_r = rmsle_loss(pred_r, actual_r)
    jax.block_until_ready(loss_r)
    ref_r = _rmsle_ref(pred_r, actual_r)
    assert jnp.allclose(loss_r, ref_r, rtol=1e-5, atol=1e-6), (loss_r, ref_r)

    print("KERNEL_OK")
</pallas_src>

<mosaic_0001>
module attributes {stable_mosaic.version = 11 : i64} {
  func.func @_rmsle_partial_kernel(%arg0: i32, %arg1: i32, %arg2: memref<16x128xf32, #tpu.memory_space<vmem>>, %arg3: memref<16x128xf32, #tpu.memory_space<vmem>>, %arg4: memref<1x8x128xf32, #tpu.memory_space<vmem>>) attributes {dimension_semantics = [#tpu.dimension_semantics<parallel>, #tpu.dimension_semantics<arbitrary>], iteration_bounds = array<i64: 1, 1>, scalar_prefetch = 0 : i64, scratch_operands = 0 : i64, tpu.core_type = #tpu.core_type<tc>, window_params = [{transform_indices = @transform_0, window_bounds = array<i64: 16, 128>}, {transform_indices = @transform_1, window_bounds = array<i64: 16, 128>}, {transform_indices = @transform_2, window_bounds = array<i64: 1, 8, 128>}]} {
    %c0_i32 = arith.constant 0 : i32
    %0 = arith.cmpi eq, %arg1, %c0_i32 : i32
    %1 = arith.extui %0 : i1 to i32
    %c0_i32_0 = arith.constant 0 : i32
    %2 = arith.cmpi ne, %1, %c0_i32_0 : i32
    scf.if %2 {
      %cst_10 = arith.constant 0.000000e+00 : f32
      %19 = vector.broadcast %cst_10 : f32 to vector<8x128xf32>
      %c0_11 = arith.constant 0 : index
      %c0_12 = arith.constant 0 : index
      %c0_13 = arith.constant 0 : index
      %20 = vector.load %arg4[%c0_11, %c0_12, %c0_13] : memref<1x8x128xf32, #tpu.memory_space<vmem>>, vector<1x8x128xf32>
      %21 = vector.shape_cast %20 : vector<1x8x128xf32> to vector<8x128xf32>
      %22 = vector.shape_cast %19 : vector<8x128xf32> to vector<1x8x128xf32>
      tpu.vector_store %arg4[%c0_11, %c0_12, %c0_13], %22 {strides = array<i32>} : memref<1x8x128xf32, #tpu.memory_space<vmem>>, vector<1x8x128xf32>,
    } else {
    }
    %c0 = arith.constant 0 : index
    %c0_1 = arith.constant 0 : index
    %3 = vector.load %arg2[%c0, %c0_1] : memref<16x128xf32, #tpu.memory_space<vmem>>, vector<16x128xf32>
    %c0_2 = arith.constant 0 : index
    %c0_3 = arith.constant 0 : index
    %4 = vector.load %arg3[%c0_2, %c0_3] : memref<16x128xf32, #tpu.memory_space<vmem>>, vector<16x128xf32>
    %5 = math.absf %3 : vector<16x128xf32>
    %6 = math.log1p %5 : vector<16x128xf32>
    %7 = math.absf %4 : vector<16x128xf32>
    %8 = math.log1p %7 : vector<16x128xf32>
    %9 = arith.subf %6, %8 : vector<16x128xf32>
    %10 = arith.mulf %9, %9 : vector<16x128xf32>
    %c0_4 = arith.constant 0 : index
    %c0_5 = arith.constant 0 : index
    %c0_6 = arith.constant 0 : index
    %11 = vector.load %arg4[%c0_4, %c0_5, %c0_6] : memref<1x8x128xf32, #tpu.memory_space<vmem>>, vector<1x8x128xf32>
    %12 = vector.shape_cast %11 : vector<1x8x128xf32> to vector<8x128xf32>
    %13 = vector.shape_cast %10 : vector<16x128xf32> to vector<2x8x128xf32>
    %cst = arith.constant dense<0.000000e+00> : vector<8x128xf32>
    %14 = vector.multi_reduction <add>, %13, %cst [0] : vector<2x8x128xf32> to vector<8x128xf32>
    %15 = arith.addf %12, %14 : vector<8x128xf32>
    %c0_7 = arith.constant 0 : index
    %c0_8 = arith.constant 0 : index
    %c0_9 = arith.constant 0 : index
    %16 = vector.load %arg4[%c0_7, %c0_8, %c0_9] : memref<1x8x128xf32, #tpu.memory_space<vmem>>, vector<1x8x128xf32>
    %17 = vector.shape_cast %16 : vector<1x8x128xf32> to vector<8x128xf32>
    %18 = vector.shape_cast %15 : vector<8x128xf32> to vector<1x8x128xf32>
    tpu.vector_store %arg4[%c0_7, %c0_8, %c0_9], %18 {strides = array<i32>} : memref<1x8x128xf32, #tpu.memory_space<vmem>>, vector<1x8x128xf32>,
    return
  }
  func.func @transform_0(%arg0: i32, %arg1: i32) -> (i32, i32) {
    %c1_i32 = arith.constant 1 : i32
    %0 = arith.muli %arg0, %c1_i32 : i32
    %1 = arith.addi %0, %arg1 : i32
    %c0_i32 = arith.constant 0 : i32
    %2 = arith.minsi %1, %c0_i32 : i32
    %c0_i32_0 = arith.constant 0 : i32
    %c0_i32_1 = arith.constant 0 : i32
    return %2, %c0_i32_0 : i32, i32
  }
  func.func @transform_1(%arg0: i32, %arg1: i32) -> (i32, i32) {
    %c1_i32 = arith.constant 1 : i32
    %0 = arith.muli %arg0, %c1_i32 : i32
    %1 = arith.addi %0, %arg1 : i32
    %c0_i32 = arith.constant 0 : i32
    %2 = arith.minsi %1, %c0_i32 : i32
    %c0_i32_0 = arith.constant 0 : i32
    %c0_i32_1 = arith.constant 0 : i32
    return %2, %c0_i32_0 : i32, i32
  }
  func.func @transform_2(%arg0: i32, %arg1: i32) -> (i32, i32, i32) {
    %c0_i32 = arith.constant 0 : i32
    %c0_i32_0 = arith.constant 0 : i32
    %c0_i32_1 = arith.constant 0 : i32
    return %arg0, %c0_i32, %c0_i32_0 : i32, i32, i32
  }
}

</mosaic_0001>

<llo_original>
// kernel: tpu_custom_call.1
$region0: #{tpu_custom_call.1}
  #allocation0 [shape = 'u32[]', space=smem, size = 0x4, offset = 0x4, fixed_abs, tag = 'smem constant byte address 0x4 - core index']
  #allocation1 [shape = 'u32[144,128]{1,0:T(1,128)}', space=vmem, size = 0x12000, scoped, tag = 'internal scratch']
  %s0 = inlined_call_operand.hbm [shape: f32[16,128], index: 0, kind: input, shape index: {}]
  %s1 = inlined_call_operand.hbm [shape: f32[16,128], index: 1, kind: input, shape index: {}]
  %s2 = inlined_call_operand.hbm [shape: f32[1,8,128], index: 2, kind: output, shape index: {}]
  %s3 = sld [smem:[#allocation0]]
  $region30: #{tpu_custom_call.1} parent=0
    _
  %s5 = ssub.s32 1, %s3
  %s6 = scalar_select 0, %s5, %s3
  $region1: #{tpu_custom_call.1} parent=0
    #allocation2 [shape = 'u8[8192]{0}', space=vmem, size = 0x2000, scoped, tag = 'input window, operand 0, single buffered']
    #allocation3 [shape = 's32[1]{0}', space=sflag, size = 0x4, scoped, tag = 'scoped memory for tpu_custom_call.1']
    #allocation4 [shape = 's32[1]{0}', space=sflag, size = 0x4, scoped, tag = 'scoped memory for tpu_custom_call.1']
    #allocation5 [shape = 'u8[8192]{0}', space=vmem, size = 0x2000, scoped, tag = 'input window, operand 1, single buffered']
    #allocation6 [shape = 's32[1]{0}', space=sflag, size = 0x4, scoped, tag = 'scoped memory for tpu_custom_call.1']
    #allocation7 [shape = 'u8[4096]{0}', space=vmem, size = 0x1000, scoped, tag = 'output window, operand 0, single buffered']
    %7 = vsyncpa [#allocation3], 0
    %8 = vsyncpa [#allocation6], 0
    %9 = vsyncpa [#allocation4], 0
    // Predicated region
    $region2: #{tpu_custom_call.1} parent=1 // pred_check
      _
    $region3: #{tpu_custom_call.1} parent=1 // pred_check_branch
      %11 = sbr.rel (0) target = $region5
    $region4: #{tpu_custom_call.1} parent=1 // pred_region
      %s12 = sadd.s32 0, 0
      %p13 = scmp.lt.s32.totalorder %s12, 0
      %s14 = scalar_select %p13, %s12, 0
      %s15 = smul.u32 2, %s14
      %s17 = ssub.s32 256, 256
      %18 = vsyncadd [#allocation3], %s17
      %s19 = smul.addr %s15, 128
      %s20 = scalar_lea.hbm %s0, %s19
      %s21 = sshll.u32 [#allocation2], 4
      %s22 = int_to_ptr.vmem [resolvable:$true] %s21
      %27 = dma.hbm_to_vmem [thread:$0]  %s20, 256, %s22, [#allocation3], 128, 128, 8
    $region5: #{tpu_custom_call.1} parent=1 // pred_fallthru
      _
    // Predicated region
    $region6: #{tpu_custom_call.1} parent=1 // pred_check
      _
    $region7: #{tpu_custom_call.1} parent=1 // pred_check_branch
      %29 = sbr.rel (0) target = $region9
    $region8: #{tpu_custom_call.1} parent=1 // pred_region
      %s30 = sadd.s32 0, 0
      %p31 = scmp.lt.s32.totalorder %s30, 0
      %s32 = scalar_select %p31, %s30, 0
      %s33 = smul.u32 2, %s32
      %s35 = ssub.s32 256, 256
      %36 = vsyncadd [#allocation6], %s35
      %s37 = smul.addr %s33, 128
      %s38 = scalar_lea.hbm %s1, %s37
      %s39 = sshll.u32 [#allocation5], 4
      %s40 = int_to_ptr.vmem [resolvable:$true] %s39
      %45 = dma.hbm_to_vmem [thread:$0]  %s38, 256, %s40, [#allocation6], 128, 128, 8
    $region9: #{tpu_custom_call.1} parent=1 // pred_fallthru
      _
    // Predicated region
    $region10: #{tpu_custom_call.1} parent=1 // pred_check
      _
    $region11: #{tpu_custom_call.1} parent=1 // pred_check_branch
      %47 = sbr.rel (0) target = $region13
    $region12: #{tpu_custom_call.1} parent=1 // pred_region
      %48 = dma.done [#allocation3], 256
    $region13: #{tpu_custom_call.1} parent=1 // pred_fallthru
      _
    // Predicated region
    $region14: #{tpu_custom_call.1} parent=1 // pred_check
      _
    $region15: #{tpu_custom_call.1} parent=1 // pred_check_branch
      %50 = sbr.rel (0) target = $region17
    $region16: #{tpu_custom_call.1} parent=1 // pred_region
      %51 = dma.done [#allocation6], 256
    $region17: #{tpu_custom_call.1} parent=1 // pred_fallthru
      _
    %s52 = sadd.s32 0, 0
    %p53 = scmp.lt.s32.totalorder %s52, 0
    %s54 = scalar_select %p53, %s52, 0
    %s55 = smul.u32 2, %s54
    %s56 = sadd.s32 0, 0
    %p57 = scmp.lt.s32.totalorder %s56, 0
    %s58 = scalar_select %p57, %s56, 0
    %s59 = smul.u32 2, %s58
    %p60 = scmp.eq.s32.totalorder 0, 0
    // Predicated region
    $region18: #{tpu_custom_call.1} parent=1 // pred_check
      %p61 = pneg %p60
    $region19: #{tpu_custom_call.1} parent=1 // pred_check_branch
      %63 = sbr.rel (%p61) target = $region21
    $region20: #{tpu_custom_call.1} parent=1 // pred_region
      %64 = vst [vmem:[#allocation7] sm:$0xff] 0.0
    $region21: #{tpu_custom_call.1} parent=1 // pred_fallthru
      _
    %v65 = vld [vmem:[#allocation2] sm:$0xff]
    %v66 = vld [vmem:[#allocation2 + $0x8] sm:$0xff]
    %v67 = vld [vmem:[#allocation5] sm:$0xff]
    %v68 = vld [vmem:[#allocation5 + $0x8] sm:$0xff]
    %v69 = vand.u32 2147483647, %v65
    %v70 = vand.u32 2147483647, %v66
    %v71 = vadd.f32 %v69, 1.0
    %v72 = vlog2.pop %v71
    %v73 = vmul.f32 %v72, 0.6931472
    %v74 = vmul.f32 -0.5, %v69
    %v75 = vadd.f32 %v74, 1.0
    %v76 = vmul.f32 %v75, %v69
    %v77 = vand.u32 2147483647, %v69
    %vm78 = vcmp.lt.f32.partialorder %v77, 0.0004427343
    %v79 = vsel %vm78, %v76, %v73
    %v80 = vadd.f32 %v70, 1.0
    %v81 = vlog2.pop %v80
    %v82 = vmul.f32 %v81, 0.6931472
    %v83 = vmul.f32 -0.5, %v70
    %v84 = vadd.f32 %v83, 1.0
    %v85 = vmul.f32 %v84, %v70
    %v86 = vand.u32 2147483647, %v70
    %vm87 = vcmp.lt.f32.partialorder %v86, 0.0004427343
    %v88 = vsel %vm87, %v85, %v82
    %v89 = vand.u32 2147483647, %v67
    %v90 = vand.u32 2147483647, %v68
    %v91 = vadd.f32 %v89, 1.0
    %v92 = vlog2.pop %v91
    %v93 = vmul.f32 %v92, 0.6931472
    %v94 = vmul.f32 -0.5, %v89
    %v95 = vadd.f32 %v94, 1.0
    %v96 = vmul.f32 %v95, %v89
    %v97 = vand.u32 2147483647, %v89
    %vm98 = vcmp.lt.f32.partialorder %v97, 0.0004427343
    %v99 = vsel %vm98, %v96, %v93
    %v100 = vadd.f32 %v90, 1.0
    %v101 = vlog2.pop %v100
    %v102 = vmul.f32 %v101, 0.6931472
    %v103 = vmul.f32 -0.5, %v90
    %v104 = vadd.f32 %v103, 1.0
    %v105 = vmul.f32 %v104, %v90
    %v106 = vand.u32 2147483647, %v90
    %vm107 = vcmp.lt.f32.partialorder %v106, 0.0004427343
    %v108 = vsel %vm107, %v105, %v102
    %v109 = vsub.f32 %v79, %v99
    %v110 = vsub.f32 %v88, %v108
    %v111 = vmul.f32 %v109, %v109
    %v112 = vmul.f32 %v110, %v110
    %v113 = vld [vmem:[#allocation7] sm:$0xff]
    %v114 = vadd.f32 %v111, %v112
    %v115 = vadd.f32 %v113, %v114
    %116 = vst [vmem:[#allocation7] sm:$0xff] %v115
    // Predicated region
    $region22: #{tpu_custom_call.1} parent=1 // pred_check
      _
    $region23: #{tpu_custom_call.1} parent=1 // pred_check_branch
      %118 = sbr.rel (0) target = $region25
    $region24: #{tpu_custom_call.1} parent=1 // pred_region
      %s120 = ssub.s32 128, 128
      %121 = vsyncadd [#allocation4], %s120
      %s123 = sshll.u32 [#allocation7], 4
      %s124 = int_to_ptr.vmem [resolvable:$true] %s123
      %126 = dma.vmem_to_hbm [thread:$0]  %s124, 128, %s2, [#allocation4]
    $region25: #{tpu_custom_call.1} parent=1 // pred_fallthru
      _
    // Predicated region
    $region26: #{tpu_custom_call.1} parent=1 // pred_check
      _
    $region27: #{tpu_custom_call.1} parent=1 // pred_check_branch
      %128 = sbr.rel (0) target = $region29
    $region28: #{tpu_custom_call.1} parent=1 // pred_region
      %129 = dma.done [#allocation4], 128
    $region29: #{tpu_custom_call.1} parent=1 // pred_fallthru
      _
    %130 = vsyncpa [#allocation3], 1
    %131 = vsyncpa [#allocation6], 1
    %132 = vsyncpa [#allocation4], 1

</llo_original>
